<compile_context>
chip_gen: v5e
topology: v5e:2x2
jax: 0.10.0
libtpu: 0.0.40
codegen_flags: <defaults>
</compile_context>

<pallas_src>
import functools

import jax
import jax.numpy as jnp
from jax.experimental import pallas as pl
from jax.experimental.pallas import tpu as pltpu


# ---------------------------------------------------------------------------
# Small helpers (padding, VMEM-aware tile selection)
# ---------------------------------------------------------------------------

def _round_up(v, m):
    return ((v + m - 1) // m) * m


def _pad_dim(dim, gran=512):
    """Pad large dims to a multiple of `gran`, small dims to a 128 multiple."""
    g = gran if dim >= gran else 128
    return _round_up(dim, g)


def _vmem_limit_bytes():
    """Generation-aware scoped-VMEM request.

    v5e/v6e (128 MiB physical) -> 64 MiB; v7x (64 MiB physical) -> ~44 MiB,
    leaving headroom for Mosaic internal scratch.
    """
    try:
        cap = pltpu.get_tpu_info().vmem_capacity_bytes
    except Exception:
        cap = 128 << 20
    return min(int(cap * 0.7), 64 << 20)


def _tile_candidates(dim, cap=None):
    cs = {t for t in (8192, 4096, 2048, 1024, 512, 256, 128)
          if t <= dim and dim % t == 0}
    cs.add(dim)
    if cap is not None:
        capped = {t for t in cs if t <= cap}
        cs = capped or {min(cs)}
    return sorted(cs, reverse=True)


def _choose_tiles(k_dim, n_dim, vmem_limit, max_tk=None, max_tn=None):
    """Largest (tk, tn) whose double-buffered bf16 weight tile fits ~half VMEM."""
    max_elems = max(128 * 128, vmem_limit // 8)   # 2 buffers * 2 bytes/elem
    best = None
    for tn in _tile_candidates(n_dim, max_tn):
        for tk in _tile_candidates(k_dim, max_tk):
            if tk * tn > max_elems:
                continue
            if (best is None or tk * tn > best[0] * best[1]
                    or (tk * tn == best[0] * best[1] and tn > best[1])):
                best = (tk, tn)
    if best is None:
        best = (min(_tile_candidates(k_dim, max_tk)),
                min(_tile_candidates(n_dim, max_tn)))
    return best


# ---------------------------------------------------------------------------
# Kernels
# ---------------------------------------------------------------------------

def tf_stage_kernel(x_ref, wcomb_ref, comb_ref, *, tk):
    """Accumulates x @ [tmat | W_gene->TF] over gene (G) tiles.

    Grid: (column tile j ["parallel"], gene tile k ["arbitrary", last]).
    x is fully resident; one merged dot per step.
    """
    k = pl.program_id(1)

    @pl.when(k == 0)
    def _init():
        comb_ref[...] = jnp.zeros_like(comb_ref)

    start = pl.multiple_of(k * tk, 128)
    xk = x_ref[:, pl.ds(start, tk)]                   # (Bp, tk) bf16, resident x
    comb_ref[...] += jnp.dot(xk, wcomb_ref[...],
                             preferred_element_type=jnp.float32)


def go_stage_kernel(x_ref, tfsum_ref, wggo_ref, wtfgo_ref, wfc2_ref,
                    go_sum_ref, go_tf_ref, out_ref, *, tk):
    """Per (GO tile j, gene tile k): accumulate gene->GO into the resident
    f32 GO_sum output block; at the last k add TF->GO, LeakyReLU and emit the
    per-GO-tile fc2 partial product."""
    k = pl.program_id(1)

    @pl.when(k == 0)
    def _init():
        go_sum_ref[...] = jnp.zeros_like(go_sum_ref)

    start = pl.multiple_of(k * tk, 128)
    xk = x_ref[:, pl.ds(start, tk)]                   # (Bp, tk) bf16, resident x
    go_sum_ref[...] += jnp.dot(xk, wggo_ref[...],
                               preferred_element_type=jnp.float32)

    @pl.when(k == pl.num_programs(1) - 1)
    def _finalize():
        go_tf = jnp.dot(tfsum_ref[...], wtfgo_ref[...],    # tf_sum already bf16
                        preferred_element_type=jnp.float32)
        go_pre = go_sum_ref[...] + go_tf
        go_sum = jnp.where(go_pre >= 0, go_pre, 0.01 * go_pre)  # LeakyReLU(0.01)
        go_tf_ref[...] = go_tf
        go_sum_ref[...] = go_sum
        # fc2 partial product for this GO tile (lane-dense, padded to 128).
        out_ref[...] = jnp.dot(go_sum.astype(jnp.bfloat16), wfc2_ref[...],
                               preferred_element_type=jnp.float32)


# ---------------------------------------------------------------------------
# Wrapper
# ---------------------------------------------------------------------------

def scgo_forward(x, params, num_class, *, max_tk=None, max_tn=None):
    """scGO classification forward.

    Returns (out, GO_sum, TF_derived_from_gene, GO_derived_from_TF),
    matching the PyTorch module's output tuple.
    """
    B, G = x.shape
    G_pad, TF2_pad = params["wcomb"].shape
    TF_pad = TF2_pad // 2
    GO_pad = params["wm_ggo"].shape[1]
    Cpad = params["wm_fc2"].shape[1]
    num_TF = params["dims"]["num_TF"]
    num_GO = params["dims"]["num_GO"]

    vmem = _vmem_limit_bytes()
    tk1, tn1 = _choose_tiles(G_pad, TF2_pad, vmem, max_tk, max_tn)
    tk2, tn2 = _choose_tiles(G_pad, GO_pad, vmem, max_tk, max_tn)

    # Pad batch to a multiple of 16 (full bf16 vregs) and genes to G_pad.
    Bp = _round_up(B, 16)
    xb = jnp.pad(x.astype(jnp.bfloat16), ((0, Bp - B), (0, G_pad - G)))

    # ---- Stage 1: merged [tmat | gene->TF] matmul, reduction over G tiles ----
    n_n1, n_k1 = TF2_pad // tn1, G_pad // tk1
    comb = pl.pallas_call(
        functools.partial(tf_stage_kernel, tk=tk1),
        out_shape=jax.ShapeDtypeStruct((Bp, TF2_pad), jnp.float32),
        grid_spec=pltpu.PrefetchScalarGridSpec(
            num_scalar_prefetch=0,
            grid=(n_n1, n_k1),
            in_specs=[
                pl.BlockSpec((Bp, G_pad), lambda j, k: (0, 0)),   # x (resident)
                pl.BlockSpec((tk1, tn1), lambda j, k: (k, j)),    # [tmat | W_gtf]
            ],
            out_specs=pl.BlockSpec((Bp, tn1), lambda j, k: (0, j)),
        ),
        compiler_params=pltpu.CompilerParams(
            dimension_semantics=("parallel", "arbitrary"),
            vmem_limit_bytes=vmem),
    )(xb, params["wcomb"])

    tf_gene_pad = comb[:, TF_pad:]                               # (Bp, TF_pad) f32
    tf_sum = (comb[:, :TF_pad] + tf_gene_pad).astype(jnp.bfloat16)

    # ---- Stage 2: GO_sum / GO_derived_from_TF / fc2 logits ----
    n_go, n_k2 = GO_pad // tn2, G_pad // tk2
    go_sum_pad, go_tf_pad, out_part = pl.pallas_call(
        functools.partial(go_stage_kernel, tk=tk2),
        out_shape=(jax.ShapeDtypeStruct((Bp, GO_pad), jnp.float32),
                   jax.ShapeDtypeStruct((Bp, GO_pad), jnp.float32),
                   jax.ShapeDtypeStruct((n_go, Bp, Cpad), jnp.float32)),
        grid_spec=pltpu.PrefetchScalarGridSpec(
            num_scalar_prefetch=0,
            grid=(n_go, n_k2),
            in_specs=[
                pl.BlockSpec((Bp, G_pad), lambda j, k: (0, 0)),     # x (resident)
                pl.BlockSpec((Bp, TF_pad), lambda j, k: (0, 0)),    # tf_sum bf16 (resident)
                pl.BlockSpec((tk2, tn2), lambda j, k: (k, j)),      # masked gene->GO W
                pl.BlockSpec((TF_pad, tn2), lambda j, k: (0, j)),   # masked TF->GO W
                pl.BlockSpec((tn2, Cpad), lambda j, k: (j, 0)),     # masked fc2 W (padded)
            ],
            out_specs=[
                pl.BlockSpec((Bp, tn2), lambda j, k: (0, j)),            # GO_sum
                pl.BlockSpec((Bp, tn2), lambda j, k: (0, j)),            # GO_derived_from_TF
                pl.BlockSpec((None, Bp, Cpad), lambda j, k: (j, 0, 0)),  # fc2 partials
            ],
        ),
        compiler_params=pltpu.CompilerParams(
            dimension_semantics=("parallel", "arbitrary"),
            vmem_limit_bytes=vmem),
    )(xb, tf_sum, params["wm_ggo"], params["wm_tfgo"], params["wm_fc2"])

    # Tiny epilogue in XLA: sum fc2 partials over GO tiles, strip padding.
    out = jnp.sum(out_part, axis=0)[:B, :num_class]
    go_sum = go_sum_pad[:B, :num_GO]
    go_tf = go_tf_pad[:B, :num_GO]
    tf_gene = tf_gene_pad[:B, :num_TF]
    return out, go_sum, tf_gene, go_tf


# ---------------------------------------------------------------------------
# Parameters (synthetic, matching the scGO module's shapes)
# ---------------------------------------------------------------------------

def init_raw_params(key, num_gene, num_TF, num_GO, num_class, mask_density=0.3):
    """f32 weights mimicking CustomizedLinear.init_params plus binary masks.

    Everything is stored transposed as (in_features, out_features).
    """
    ks = jax.random.split(key, 9)

    def w(k, in_f, out_f):
        stdv = 1.0 / jnp.sqrt(jnp.float32(in_f))
        return jax.random.uniform(k, (in_f, out_f), jnp.float32, -stdv, stdv)

    def m(k, in_f, out_f):
        return jax.random.bernoulli(k, mask_density, (in_f, out_f)).astype(jnp.float32)

    return {
        "tmat":   jax.random.normal(ks[0], (num_gene, num_TF), jnp.float32) * 0.05,
        "w_gtf":  w(ks[1], num_gene, num_TF),
        "m_gtf":  m(ks[2], num_gene, num_TF),
        "w_tfgo": w(ks[3], num_TF, num_GO),
        "m_tfgo": m(ks[4], num_TF, num_GO),
        "w_ggo":  w(ks[5], num_gene, num_GO),
        "m_ggo":  m(ks[6], num_gene, num_GO),
        "w_fc2":  w(ks[7], num_GO, num_class),
        "m_fc2":  m(ks[8], num_GO, num_class),
    }


def prepare_params(raw, num_gene, num_TF, num_GO, num_class, *, pad_gran=512):
    """Fold masks into weights, zero-pad dims to tileable sizes, cast to bf16,
    and merge the two stage-1 weight streams into one (G, 2*TF) matrix."""
    G_pad = _pad_dim(num_gene, pad_gran)
    TF_pad = _round_up(num_TF, 128)
    GO_pad = _pad_dim(num_GO, pad_gran)
    C_pad = _round_up(num_class, 128)

    def pad2(a, rows, cols):
        return jnp.pad(a, ((0, rows - a.shape[0]), (0, cols - a.shape[1])))

    tmat = pad2(raw["tmat"], G_pad, TF_pad)
    wm_gtf = pad2(raw["w_gtf"] * raw["m_gtf"], G_pad, TF_pad)
    wcomb = jnp.concatenate([tmat, wm_gtf], axis=1).astype(jnp.bfloat16)
    return {
        "wcomb":   wcomb,                                                   # (G_pad, 2*TF_pad)
        "wm_tfgo": pad2(raw["w_tfgo"] * raw["m_tfgo"], TF_pad, GO_pad).astype(jnp.bfloat16),
        "wm_ggo":  pad2(raw["w_ggo"] * raw["m_ggo"], G_pad, GO_pad).astype(jnp.bfloat16),
        "wm_fc2":  pad2(raw["w_fc2"] * raw["m_fc2"], GO_pad, C_pad).astype(jnp.bfloat16),
        "dims":    {"num_gene": num_gene, "num_TF": num_TF, "num_GO": num_GO},
    }


# ---------------------------------------------------------------------------
# Reference (pure JAX, same bf16/f32-accumulate numerics as the kernel)
# ---------------------------------------------------------------------------

def ref_forward(x, p, num_class):
    num_TF = p["dims"]["num_TF"]
    num_GO = p["dims"]["num_GO"]
    B, G = x.shape
    G_pad, TF2_pad = p["wcomb"].shape
    TF_pad = TF2_pad // 2
    xb = jnp.pad(x.astype(jnp.bfloat16), ((0, 0), (0, G_pad - G)))
    tf_res = jnp.dot(xb, p["wcomb"][:, :TF_pad], preferred_element_type=jnp.float32)
    tf_gene = jnp.dot(xb, p["wcomb"][:, TF_pad:], preferred_element_type=jnp.float32)
    tf_sum = tf_res + tf_gene
    go_tf = jnp.dot(tf_sum.astype(jnp.bfloat16), p["wm_tfgo"],
                    preferred_element_type=jnp.float32)
    go_gene = jnp.dot(xb, p["wm_ggo"], preferred_element_type=jnp.float32)
    go_pre = go_tf + go_gene
    go_sum = jnp.where(go_pre >= 0, go_pre, 0.01 * go_pre)
    out = jnp.dot(go_sum.astype(jnp.bfloat16), p["wm_fc2"],
                  preferred_element_type=jnp.float32)
    return (out[:, :num_class], go_sum[:, :num_GO],
            tf_gene[:, :num_TF], go_tf[:, :num_GO])


# TODO(synk): bn0/bn1/bn2, fc1, fc3, fc4, the regression head and nn.ReLU are
# constructed by scGO.__init__ but never used on the classification forward
# path, so they are intentionally not implemented here.

if __name__ == "__main__":
    # Small shapes consistent with scGO: x is (batch, num_gene).
    B, num_gene, num_TF, num_GO, num_class = 8, 512, 128, 256, 8

    key = jax.random.PRNGKey(0)
    kx, kp = jax.random.split(key)
    x = jax.random.normal(kx, (B, num_gene), jnp.float32)

    raw = init_raw_params(kp, num_gene, num_TF, num_GO, num_class)
    params = prepare_params(raw, num_gene, num_TF, num_GO, num_class)

    refs = ref_forward(x, params, num_class)
    names = ["out", "GO_sum", "TF_derived_from_gene", "GO_derived_from_TF"]

    # Default path: generation-aware, largest-fitting (here full-extent) tiles.
    outs = jax.block_until_ready(scgo_forward(x, params, num_class))
    for name, o, r in zip(names, outs, refs):
        assert o.shape == r.shape and o.dtype == r.dtype, name
        assert jnp.allclose(o, r, atol=2e-3, rtol=2e-3), name

    # Capped tiles: exercises the multi-step reduction and parallel grid axes.
    outs_small = jax.block_until_ready(
        scgo_forward(x, params, num_class, max_tk=128, max_tn=128))
    for name, o, r in zip(names, outs_small, refs):
        assert o.shape == r.shape and o.dtype == r.dtype, name
        assert jnp.allclose(o, r, atol=2e-3, rtol=2e-3), name

    print("KERNEL_OK")
</pallas_src>

<mosaic_0001>
module attributes {stable_mosaic.version = 11 : i64} {
  func.func @tf_stage_kernel(%arg0: i32, %arg1: i32, %arg2: memref<16x512xbf16, #tpu.memory_space<vmem>>, %arg3: memref<512x256xbf16, #tpu.memory_space<vmem>>, %arg4: memref<16x256xf32, #tpu.memory_space<vmem>>) attributes {dimension_semantics = [#tpu.dimension_semantics<parallel>, #tpu.dimension_semantics<arbitrary>], iteration_bounds = array<i64: 1, 1>, scalar_prefetch = 0 : i64, scratch_operands = 0 : i64, tpu.core_type = #tpu.core_type<tc>, window_params = [{pipeline_mode = #tpu.pipeline_mode<synchronous>, transform_indices = @transform_0, window_bounds = array<i64: 16, 512>}, {transform_indices = @transform_1, window_bounds = array<i64: 512, 256>}, {transform_indices = @transform_2, window_bounds = array<i64: 16, 256>}]} {
    %c0_i32 = arith.constant 0 : i32
    %0 = arith.cmpi eq, %arg1, %c0_i32 : i32
    %1 = arith.extui %0 : i1 to i32
    %c0_i32_0 = arith.constant 0 : i32
    %2 = arith.cmpi ne, %1, %c0_i32_0 : i32
    scf.if %2 {
      %cst_7 = arith.constant 0.000000e+00 : f32
      %12 = vector.broadcast %cst_7 : f32 to vector<16x256xf32>
      %c0_8 = arith.constant 0 : index
      %c0_9 = arith.constant 0 : index
      %13 = vector.load %arg4[%c0_8, %c0_9] : memref<16x256xf32, #tpu.memory_space<vmem>>, vector<16x256xf32>
      tpu.vector_store %arg4[%c0_8, %c0_9], %12 {strides = array<i32>} : memref<16x256xf32, #tpu.memory_space<vmem>>, vector<16x256xf32>,
    } else {
    }
    %c512_i32 = arith.constant 512 : i32
    %3 = arith.muli %arg1, %c512_i32 : i32
    %4 = tpu.assume_multiple %3, 128 : i32
    %c0 = arith.constant 0 : index
    %5 = arith.index_cast %4 : i32 to index
    %6 = vector.load %arg2[%c0, %5] : memref<16x512xbf16, #tpu.memory_space<vmem>>, vector<16x512xbf16>
    %c0_1 = arith.constant 0 : index
    %c0_2 = arith.constant 0 : index
    %7 = vector.load %arg4[%c0_1, %c0_2] : memref<16x256xf32, #tpu.memory_space<vmem>>, vector<16x256xf32>
    %c0_3 = arith.constant 0 : index
    %c0_4 = arith.constant 0 : index
    %8 = vector.load %arg3[%c0_3, %c0_4] : memref<512x256xbf16, #tpu.memory_space<vmem>>, vector<512x256xbf16>
    %cst = arith.constant dense<0.000000e+00> : vector<16x256xf32>
    %9 = tpu.matmul %6, %8, %cst {dimension_numbers = #tpu.dot_dimension_numbers<[1], [0], [0], [1], [0, 0, 1, 1], [], []>} : vector<16x512xbf16>, vector<512x256xbf16>, vector<16x256xf32> -> vector<16x256xf32>
    %10 = arith.addf %7, %9 : vector<16x256xf32>
    %c0_5 = arith.constant 0 : index
    %c0_6 = arith.constant 0 : index
    %11 = vector.load %arg4[%c0_5, %c0_6] : memref<16x256xf32, #tpu.memory_space<vmem>>, vector<16x256xf32>
    tpu.vector_store %arg4[%c0_5, %c0_6], %10 {strides = array<i32>} : memref<16x256xf32, #tpu.memory_space<vmem>>, vector<16x256xf32>,
    return
  }
  func.func @transform_0(%arg0: i32, %arg1: i32) -> (i32, i32) {
    %c0_i32 = arith.constant 0 : i32
    %c0_i32_0 = arith.constant 0 : i32
    %c0_i32_1 = arith.constant 0 : i32
    return %c0_i32, %c0_i32_0 : i32, i32
  }
  func.func @transform_1(%arg0: i32, %arg1: i32) -> (i32, i32) {
    %c0_i32 = arith.constant 0 : i32
    return %arg1, %arg0 : i32, i32
  }
  func.func @transform_2(%arg0: i32, %arg1: i32) -> (i32, i32) {
    %c0_i32 = arith.constant 0 : i32
    %c0_i32_0 = arith.constant 0 : i32
    return %c0_i32, %arg0 : i32, i32
  }
}

</mosaic_0001>

<llo_original>
// kernel: tpu_custom_call.1
$region0: #{tpu_custom_call.1}
  #allocation0 [shape = 'u32[]', space=smem, size = 0x4, offset = 0x4, fixed_abs, tag = 'smem constant byte address 0x4 - core index']
  #allocation1 [shape = 'u32[72,128]{1,0:T(1,128)}', space=vmem, size = 0x9000, scoped, tag = 'internal scratch']
  %s0 = inlined_call_operand.hbm [shape: bf16[16,512], index: 0, kind: input, shape index: {}]
  %s1 = inlined_call_operand.hbm [shape: bf16[512,256], index: 1, kind: input, shape index: {}]
  %s2 = inlined_call_operand.hbm [shape: f32[16,256], index: 2, kind: output, shape index: {}]
  %s3 = sld [smem:[#allocation0]]
  $region30: #{tpu_custom_call.1} parent=0
    _
  %s5 = ssub.s32 1, %s3
  %s6 = scalar_select 0, %s5, %s3
  $region1: #{tpu_custom_call.1} parent=0
    #allocation2 [shape = 'u8[16384]{0}', space=vmem, size = 0x4000, scoped, tag = 'input window, operand 0, single buffered']
    #allocation3 [shape = 's32[1]{0}', space=sflag, size = 0x4, scoped, tag = 'scoped memory for tpu_custom_call.1']
    #allocation4 [shape = 's32[1]{0}', space=sflag, size = 0x4, scoped, tag = 'scoped memory for tpu_custom_call.1']
    #allocation5 [shape = 'u8[262144]{0}', space=vmem, size = 0x40000, scoped, tag = 'input window, operand 1, single buffered']
    #allocation6 [shape = 's32[1]{0}', space=sflag, size = 0x4, scoped, tag = 'scoped memory for tpu_custom_call.1']
    #allocation7 [shape = 'u8[16384]{0}', space=vmem, size = 0x4000, scoped, tag = 'output window, operand 0, single buffered']
    %7 = vsyncpa [#allocation3], 0
    %8 = vsyncpa [#allocation6], 0
    %9 = vsyncpa [#allocation4], 0
    // Predicated region
    $region2: #{tpu_custom_call.1} parent=1 // pred_check
      _
    $region3: #{tpu_custom_call.1} parent=1 // pred_check_branch
      %11 = sbr.rel (0) target = $region5
    $region4: #{tpu_custom_call.1} parent=1 // pred_region
      %13 = vsyncadd [#allocation3], 0
      %s14 = sshll.u32 %s0, 4
      %s15 = int_to_ptr.hbm [resolvable:$true] %s14
      %s16 = sshll.u32 [#allocation2], 4
      %s17 = int_to_ptr.vmem [resolvable:$true] %s16
      %22 = dma.hbm_to_vmem [thread:$0]  %s15, 512, %s17, [#allocation3], 256, 256, 16
    $region5: #{tpu_custom_call.1} parent=1 // pred_fallthru
      _
    // Predicated region
    $region6: #{tpu_custom_call.1} parent=1 // pred_check
      _
    $region7: #{tpu_custom_call.1} parent=1 // pred_check_branch
      %24 = sbr.rel (0) target = $region9
    $region8: #{tpu_custom_call.1} parent=1 // pred_region
      %26 = vsyncadd [#allocation6], 0
      %s27 = sshll.u32 %s1, 4
      %s28 = int_to_ptr.hbm [resolvable:$true] %s27
      %s29 = sshll.u32 [#allocation5], 4
      %s30 = int_to_ptr.vmem [resolvable:$true] %s29
      %35 = dma.hbm_to_vmem [thread:$0]  %s28, 8192, %s30, [#allocation6], 128, 128, 8
    $region9: #{tpu_custom_call.1} parent=1 // pred_fallthru
      _
    // Predicated region
    $region10: #{tpu_custom_call.1} parent=1 // pred_check
      _
    $region11: #{tpu_custom_call.1} parent=1 // pred_check_branch
      %37 = sbr.rel (0) target = $region13
    $region12: #{tpu_custom_call.1} parent=1 // pred_region
      %39 = dma.done [#allocation3], 512
    $region13: #{tpu_custom_call.1} parent=1 // pred_fallthru
      _
    // Predicated region
    $region14: #{tpu_custom_call.1} parent=1 // pred_check
      _
    $region15: #{tpu_custom_call.1} parent=1 // pred_check_branch
      %41 = sbr.rel (0) target = $region17
    $region16: #{tpu_custom_call.1} parent=1 // pred_region
      %43 = dma.done [#allocation6], 8192
    $region17: #{tpu_custom_call.1} parent=1 // pred_fallthru
      _
    %p44 = scmp.eq.s32.totalorder 0, 0
    // Predicated region
    $region18: #{tpu_custom_call.1} parent=1 // pred_check
      %p45 = pneg %p44
    $region19: #{tpu_custom_call.1} parent=1 // pred_check_branch
      %47 = sbr.rel (%p45) target = $region21
    $region20: #{tpu_custom_call.1} parent=1 // pred_region
      %48 = vst [vmem:[#allocation7] sm:$0xff] 0.0
      %49 = vst [vmem:[#allocation7 + $0x8] sm:$0xff] 0.0
      %50 = vst [vmem:[#allocation7 + $0x10] sm:$0xff] 0.0
      %51 = vst [vmem:[#allocation7 + $0x18] sm:$0xff] 0.0
    $region21: #{tpu_custom_call.1} parent=1 // pred_fallthru
      _
    %s52 = smul.u32 0, 512
    %s53 = sshra.s32 %s52, 7
    %s54 = sand.u32 %s52, 127
    %s55 = smul.addr %s53, 4
    %s56 = scalar_lea.vmem [#allocation2], %s55
    %v57 = vld [vmem:[%s56] sm:$0xff]
    %v58 = vld [vmem:[%s56 + $0x8] sm:$0xff]
    %v59 = vld [vmem:[%s56 + $0x10] sm:$0xff]
    %v60 = vld [vmem:[%s56 + $0x18] sm:$0xff]
    %v61 = vld [vmem:[#allocation7] sm:$0xff]
    %v62 = vld [vmem:[#allocation7 + $0x8] sm:$0xff]
    %v63 = vld [vmem:[#allocation7 + $0x10] sm:$0xff]
    %v64 = vld [vmem:[#allocation7 + $0x18] sm:$0xff]
    %v65 = vld [vmem:[#allocation5] sm:$0xff]
    %v66 = vld [vmem:[#allocation5 + $0x8] sm:$0xff]
    %v67 = vld [vmem:[#allocation5 + $0x10] sm:$0xff]
    %v68 = vld [vmem:[#allocation5 + $0x18] sm:$0xff]
    %v69 = vld [vmem:[#allocation5 + $0x20] sm:$0xff]
    %v70 = vld [vmem:[#allocation5 + $0x28] sm:$0xff]
    %v71 = vld [vmem:[#allocation5 + $0x30] sm:$0xff]
    %v72 = vld [vmem:[#allocation5 + $0x38] sm:$0xff]
    %v73 = vld [vmem:[#allocation5 + $0x40] sm:$0xff]
    %v74 = vld [vmem:[#allocation5 + $0x48] sm:$0xff]
    %v75 = vld [vmem:[#allocation5 + $0x50] sm:$0xff]
    %v76 = vld [vmem:[#allocation5 + $0x58] sm:$0xff]
    %v77 = vld [vmem:[#allocation5 + $0x60] sm:$0xff]
    %v78 = vld [vmem:[#allocation5 + $0x68] sm:$0xff]
    %v79 = vld [vmem:[#allocation5 + $0x70] sm:$0xff]
    %v80 = vld [vmem:[#allocation5 + $0x78] sm:$0xff]
    %v81 = vld [vmem:[#allocation5 + $0x80] sm:$0xff]
    %v82 = vld [vmem:[#allocation5 + $0x88] sm:$0xff]
    %v83 = vld [vmem:[#allocation5 + $0x90] sm:$0xff]
    %v84 = vld [vmem:[#allocation5 + $0x98] sm:$0xff]
    %v85 = vld [vmem:[#allocation5 + $0xa0] sm:$0xff]
    %v86 = vld [vmem:[#allocation5 + $0xa8] sm:$0xff]
    %v87 = vld [vmem:[#allocation5 + $0xb0] sm:$0xff]
    %v88 = vld [vmem:[#allocation5 + $0xb8] sm:$0xff]
    %v89 = vld [vmem:[#allocation5 + $0xc0] sm:$0xff]
    %v90 = vld [vmem:[#allocation5 + $0xc8] sm:$0xff]
    %v91 = vld [vmem:[#allocation5 + $0xd0] sm:$0xff]
    %v92 = vld [vmem:[#allocation5 + $0xd8] sm:$0xff]
    %v93 = vld [vmem:[#allocation5 + $0xe0] sm:$0xff]
    %v94 = vld [vmem:[#allocation5 + $0xe8] sm:$0xff]
    %v95 = vld [vmem:[#allocation5 + $0xf0] sm:$0xff]
    %v96 = vld [vmem:[#allocation5 + $0xf8] sm:$0xff]
    %v97 = vld [vmem:[#allocation5 + $0x100] sm:$0xff]
    %v98 = vld [vmem:[#allocation5 + $0x108] sm:$0xff]
    %v99 = vld [vmem:[#allocation5 + $0x110] sm:$0xff]
    %v100 = vld [vmem:[#allocation5 + $0x118] sm:$0xff]
    %v101 = vld [vmem:[#allocation5 + $0x120] sm:$0xff]
    %v102 = vld [vmem:[#allocation5 + $0x128] sm:$0xff]
    %v103 = vld [vmem:[#allocation5 + $0x130] sm:$0xff]
    %v104 = vld [vmem:[#allocation5 + $0x138] sm:$0xff]
    %v105 = vld [vmem:[#allocation5 + $0x140] sm:$0xff]
    %v106 = vld [vmem:[#allocation5 + $0x148] sm:$0xff]
    %v107 = vld [vmem:[#allocation5 + $0x150] sm:$0xff]
    %v108 = vld [vmem:[#allocation5 + $0x158] sm:$0xff]
    %v109 = vld [vmem:[#allocation5 + $0x160] sm:$0xff]
    %v110 = vld [vmem:[#allocation5 + $0x168] sm:$0xff]
    %v111 = vld [vmem:[#allocation5 + $0x170] sm:$0xff]
    %v112 = vld [vmem:[#allocation5 + $0x178] sm:$0xff]
    %v113 = vld [vmem:[#allocation5 + $0x180] sm:$0xff]
    %v114 = vld [vmem:[#allocation5 + $0x188] sm:$0xff]
    %v115 = vld [vmem:[#allocation5 + $0x190] sm:$0xff]
    %v116 = vld [vmem:[#allocation5 + $0x198] sm:$0xff]
    %v117 = vld [vmem:[#allocation5 + $0x1a0] sm:$0xff]
    %v118 = vld [vmem:[#allocation5 + $0x1a8] sm:$0xff]
    %v119 = vld [vmem:[#allocation5 + $0x1b0] sm:$0xff]
    %v120 = vld [vmem:[#allocation5 + $0x1b8] sm:$0xff]
    %v121 = vld [vmem:[#allocation5 + $0x1c0] sm:$0xff]
    %v122 = vld [vmem:[#allocation5 + $0x1c8] sm:$0xff]
    %v123 = vld [vmem:[#allocation5 + $0x1d0] sm:$0xff]
    %v124 = vld [vmem:[#allocation5 + $0x1d8] sm:$0xff]
    %v125 = vld [vmem:[#allocation5 + $0x1e0] sm:$0xff]
    %v126 = vld [vmem:[#allocation5 + $0x1e8] sm:$0xff]
    %v127 = vld [vmem:[#allocation5 + $0x1f0] sm:$0xff]
    %v128 = vld [vmem:[#allocation5 + $0x1f8] sm:$0xff]
    %v133 = vunpack.c.l.b16 %v57
    %v134 = vunpack.c.h.b16 %v57
    %v135 = vunpack.c.l.b16 %v58
    %v136 = vunpack.c.h.b16 %v58
    %v137 = vunpack.c.l.b16 %v59
    %v138 = vunpack.c.h.b16 %v59
    %v139 = vunpack.c.l.b16 %v60
    %v140 = vunpack.c.h.b16 %v60
    %v141 = vpack.c.b16 %v137, %v133
    %v142 = vpack.c.b16 %v138, %v134
    %v143 = vpack.c.b16 %v139, %v135
    %v144 = vpack.c.b16 %v140, %v136
    %v213 = vunpack.c.l.b16 %v65
    %v214 = vunpack.c.h.b16 %v65
    %v215 = vunpack.c.l.b16 %v66
    %v216 = vunpack.c.h.b16 %v66
    %v217 = vunpack.c.l.b16 %v67
    %v218 = vunpack.c.h.b16 %v67
    %v219 = vunpack.c.l.b16 %v68
    %v220 = vunpack.c.h.b16 %v68
    %v221 = vunpack.c.l.b16 %v69
    %v222 = vunpack.c.h.b16 %v69
    %v223 = vunpack.c.l.b16 %v70
    %v224 = vunpack.c.h.b16 %v70
    %v225 = vunpack.c.l.b16 %v71
    %v226 = vunpack.c.h.b16 %v71
    %v227 = vunpack.c.l.b16 %v72
    %v228 = vunpack.c.h.b16 %v72
    %v229 = vunpack.c.l.b16 %v73
    %v230 = vunpack.c.h.b16 %v73
    %v231 = vunpack.c.l.b16 %v74
    %v232 = vunpack.c.h.b16 %v74
    %v233 = vunpack.c.l.b16 %v75
    %v234 = vunpack.c.h.b16 %v75
    %v235 = vunpack.c.l.b16 %v76
    %v236 = vunpack.c.h.b16 %v76
    %v237 = vunpack.c.l.b16 %v77
    %v238 = vunpack.c.h.b16 %v77
    %v239 = vunpack.c.l.b16 %v78
    %v240 = vunpack.c.h.b16 %v78
    %v241 = vunpack.c.l.b16 %v79
    %v242 = vunpack.c.h.b16 %v79
    %v243 = vunpack.c.l.b16 %v80
    %v244 = vunpack.c.h.b16 %v80
    %v245 = vunpack.c.l.b16 %v81
    %v246 = vunpack.c.h.b16 %v81
    %v247 = vunpack.c.l.b16 %v82
    %v248 = vunpack.c.h.b16 %v82
    %v249 = vunpack.c.l.b16 %v83
    %v250 = vunpack.c.h.b16 %v83
    %v251 = vunpack.c.l.b16 %v84
    %v252 = vunpack.c.h.b16 %v84
    %v253 = vunpack.c.l.b16 %v85
    %v254 = vunpack.c.h.b16 %v85
    %v255 = vunpack.c.l.b16 %v86
    %v256 = vunpack.c.h.b16 %v86
    %v257 = vunpack.c.l.b16 %v87
    %v258 = vunpack.c.h.b16 %v87
    %v259 = vunpack.c.l.b16 %v88
    %v260 = vunpack.c.h.b16 %v88
    %v261 = vunpack.c.l.b16 %v89
    %v262 = vunpack.c.h.b16 %v89
    %v263 = vunpack.c.l.b16 %v90
    %v264 = vunpack.c.h.b16 %v90
    %v265 = vunpack.c.l.b16 %v91
    %v266 = vunpack.c.h.b16 %v91
    %v267 = vunpack.c.l.b16 %v92
    %v268 = vunpack.c.h.b16 %v92
    %v269 = vunpack.c.l.b16 %v93
    %v270 = vunpack.c.h.b16 %v93
    %v271 = vunpack.c.l.b16 %v94
    %v272 = vunpack.c.h.b16 %v94
    %v273 = vunpack.c.l.b16 %v95
    %v274 = vunpack.c.h.b16 %v95
    %v275 = vunpack.c.l.b16 %v96
    %v276 = vunpack.c.h.b16 %v96
    %v277 = vunpack.c.l.b16 %v97
    %v278 = vunpack.c.h.b16 %v97
    %v279 = vunpack.c.l.b16 %v98
    %v280 = vunpack.c.h.b16 %v98
    %v281 = vunpack.c.l.b16 %v99
    %v282 = vunpack.c.h.b16 %v99
    %v283 = vunpack.c.l.b16 %v100
    %v284 = vunpack.c.h.b16 %v100
    %v285 = vunpack.c.l.b16 %v101
    %v286 = vunpack.c.h.b16 %v101
    %v287 = vunpack.c.l.b16 %v102
    %v288 = vunpack.c.h.b16 %v102
    %v289 = vunpack.c.l.b16 %v103
    %v290 = vunpack.c.h.b16 %v103
    %v291 = vunpack.c.l.b16 %v104
    %v292 = vunpack.c.h.b16 %v104
    %v293 = vunpack.c.l.b16 %v105
    %v294 = vunpack.c.h.b16 %v105
    %v295 = vunpack.c.l.b16 %v106
    %v296 = vunpack.c.h.b16 %v106
    %v297 = vunpack.c.l.b16 %v107
    %v298 = vunpack.c.h.b16 %v107
    %v299 = vunpack.c.l.b16 %v108
    %v300 = vunpack.c.h.b16 %v108
    %v301 = vunpack.c.l.b16 %v109
    %v302 = vunpack.c.h.b16 %v109
    %v303 = vunpack.c.l.b16 %v110
    %v304 = vunpack.c.h.b16 %v110
    %v305 = vunpack.c.l.b16 %v111
    %v306 = vunpack.c.h.b16 %v111
    %v307 = vunpack.c.l.b16 %v112
    %v308 = vunpack.c.h.b16 %v112
    %v309 = vunpack.c.l.b16 %v113
    %v310 = vunpack.c.h.b16 %v113
    %v311 = vunpack.c.l.b16 %v114
    %v312 = vunpack.c.h.b16 %v114
    %v313 = vunpack.c.l.b16 %v115
    %v314 = vunpack.c.h.b16 %v115
    %v315 = vunpack.c.l.b16 %v116
    %v316 = vunpack.c.h.b16 %v116
    %v317 = vunpack.c.l.b16 %v117
    %v318 = vunpack.c.h.b16 %v117
    %v319 = vunpack.c.l.b16 %v118
    %v320 = vunpack.c.h.b16 %v118
    %v321 = vunpack.c.l.b16 %v119
    %v322 = vunpack.c.h.b16 %v119
    %v323 = vunpack.c.l.b16 %v120
    %v324 = vunpack.c.h.b16 %v120
    %v325 = vunpack.c.l.b16 %v121
    %v326 = vunpack.c.h.b16 %v121
    %v327 = vunpack.c.l.b16 %v122
    %v328 = vunpack.c.h.b16 %v122
    %v329 = vunpack.c.l.b16 %v123
    %v330 = vunpack.c.h.b16 %v123
    %v331 = vunpack.c.l.b16 %v124
    %v332 = vunpack.c.h.b16 %v124
    %v333 = vunpack.c.l.b16 %v125
    %v334 = vunpack.c.h.b16 %v125
    %v335 = vunpack.c.l.b16 %v126
    %v336 = vunpack.c.h.b16 %v126
    %v337 = vunpack.c.l.b16 %v127
    %v338 = vunpack.c.h.b16 %v127
    %v339 = vunpack.c.l.b16 %v128
    %v340 = vunpack.c.h.b16 %v128
    %v341 = vpack.c.b16 %v215, %v213
    %v342 = vpack.c.b16 %v216, %v214
    %v343 = vpack.c.b16 %v219, %v217
    %v344 = vpack.c.b16 %v220, %v218
    %v345 = vpack.c.b16 %v223, %v221
    %v346 = vpack.c.b16 %v224, %v222
    %v347 = vpack.c.b16 %v227, %v225
    %v348 = vpack.c.b16 %v228, %v226
    %v349 = vpack.c.b16 %v231, %v229
    %v350 = vpack.c.b16 %v232, %v230
    %v351 = vpack.c.b16 %v235, %v233
    %v352 = vpack.c.b16 %v236, %v234
    %v353 = vpack.c.b16 %v239, %v237
    %v354 = vpack.c.b16 %v240, %v238
    %v355 = vpack.c.b16 %v243, %v241
    %v356 = vpack.c.b16 %v244, %v242
    %v357 = vpack.c.b16 %v247, %v245
    %v358 = vpack.c.b16 %v248, %v246
    %v359 = vpack.c.b16 %v251, %v249
    %v360 = vpack.c.b16 %v252, %v250
    %v361 = vpack.c.b16 %v255, %v253
    %v362 = vpack.c.b16 %v256, %v254
    %v363 = vpack.c.b16 %v259, %v257
    %v364 = vpack.c.b16 %v260, %v258
    %v365 = vpack.c.b16 %v263, %v261
    %v366 = vpack.c.b16 %v264, %v262
    %v367 = vpack.c.b16 %v267, %v265
    %v368 = vpack.c.b16 %v268, %v266
    %v369 = vpack.c.b16 %v271, %v269
    %v370 = vpack.c.b16 %v272, %v270
    %v371 = vpack.c.b16 %v275, %v273
    %v372 = vpack.c.b16 %v276, %v274
    %v373 = vpack.c.b16 %v279, %v277
    %v374 = vpack.c.b16 %v280, %v278
    %v375 = vpack.c.b16 %v283, %v281
    %v376 = vpack.c.b16 %v284, %v282
    %v377 = vpack.c.b16 %v287, %v285
    %v378 = vpack.c.b16 %v288, %v286
    %v379 = vpack.c.b16 %v291, %v289
    %v380 = vpack.c.b16 %v292, %v290
    %v381 = vpack.c.b16 %v295, %v293
    %v382 = vpack.c.b16 %v296, %v294
    %v383 = vpack.c.b16 %v299, %v297
    %v384 = vpack.c.b16 %v300, %v298
    %v385 = vpack.c.b16 %v303, %v301
    %v386 = vpack.c.b16 %v304, %v302
    %v387 = vpack.c.b16 %v307, %v305
    %v388 = vpack.c.b16 %v308, %v306
    %v389 = vpack.c.b16 %v311, %v309
    %v390 = vpack.c.b16 %v312, %v310
    %v391 = vpack.c.b16 %v315, %v313
    %v392 = vpack.c.b16 %v316, %v314
    %v393 = vpack.c.b16 %v319, %v317
    %v394 = vpack.c.b16 %v320, %v318
    %v395 = vpack.c.b16 %v323, %v321
    %v396 = vpack.c.b16 %v324, %v322
    %v397 = vpack.c.b16 %v327, %v325
    %v398 = vpack.c.b16 %v328, %v326
    %v399 = vpack.c.b16 %v331, %v329
    %v400 = vpack.c.b16 %v332, %v330
    %v401 = vpack.c.b16 %v335, %v333
    %v402 = vpack.c.b16 %v336, %v334
    %v403 = vpack.c.b16 %v339, %v337
    %v404 = vpack.c.b16 %v340, %v338
    %469 = vmatpush.bf16.msra.mxu0 %v355
    %470 = vmatpush.bf16.msra.mxu0 %v353
    %471 = vmatpush.bf16.msra.mxu0 %v351
    %472 = vmatpush.bf16.msra.mxu0 %v349
    %473 = vmatpush.bf16.msra.mxu0 %v347
    %474 = vmatpush.bf16.msra.mxu0 %v345
    %475 = vmatpush.bf16.msra.mxu0 %v343
    %476 = vmatpush.bf16.msra.mxu0 %v341
    %477 = vmatmul.bf16.gmra.mxu0 %v141
    %v478 = vpop.f32.mrf.mxu0
    %v479 = vadd.f32 0.0, %v478
    %v480 = vpop.f32.mrf.mxu0
    %v481 = vadd.f32 0.0, %v480
    %482 = vdwg.mxu0
    %483 = vmatpush.bf16.msra.mxu0 %v371
    %484 = vmatpush.bf16.msra.mxu0 %v369
    %485 = vmatpush.bf16.msra.mxu0 %v367
    %486 = vmatpush.bf16.msra.mxu0 %v365
    %487 = vmatpush.bf16.msra.mxu0 %v363
    %488 = vmatpush.bf16.msra.mxu0 %v361
    %489 = vmatpush.bf16.msra.mxu0 %v359
    %490 = vmatpush.bf16.msra.mxu0 %v357
    %491 = vmatmul.bf16.gmra.mxu0 %v142
    %v492 = vpop.f32.mrf.mxu0
    %v493 = vadd.f32 %v479, %v492
    %v494 = vpop.f32.mrf.mxu0
    %v495 = vadd.f32 %v481, %v494
    %496 = vdwg.mxu0
    %497 = vmatpush.bf16.msra.mxu0 %v387
    %498 = vmatpush.bf16.msra.mxu0 %v385
    %499 = vmatpush.bf16.msra.mxu0 %v383
    %500 = vmatpush.bf16.msra.mxu0 %v381
    %501 = vmatpush.bf16.msra.mxu0 %v379
    %502 = vmatpush.bf16.msra.mxu0 %v377
    %503 = vmatpush.bf16.msra.mxu0 %v375
    %504 = vmatpush.bf16.msra.mxu0 %v373
    %505 = vmatmul.bf16.gmra.mxu0 %v143
    %v506 = vpop.f32.mrf.mxu0
    %v507 = vadd.f32 %v493, %v506
    %v508 = vpop.f32.mrf.mxu0
    %v509 = vadd.f32 %v495, %v508
    %510 = vdwg.mxu0
    %511 = vmatpush.bf16.msra.mxu0 %v403
    %512 = vmatpush.bf16.msra.mxu0 %v401
    %513 = vmatpush.bf16.msra.mxu0 %v399
    %514 = vmatpush.bf16.msra.mxu0 %v397
    %515 = vmatpush.bf16.msra.mxu0 %v395
    %516 = vmatpush.bf16.msra.mxu0 %v393
    %517 = vmatpush.bf16.msra.mxu0 %v391
    %518 = vmatpush.bf16.msra.mxu0 %v389
    %519 = vmatmul.bf16.gmra.mxu0 %v144
    %v520 = vpop.f32.mrf.mxu0
    %v521 = vadd.f32 %v507, %v520
    %v522 = vpop.f32.mrf.mxu0
    %v523 = vadd.f32 %v509, %v522
    %524 = vdwg.mxu0
    %525 = vmatpush.bf16.msra.mxu0 %v356
    %526 = vmatpush.bf16.msra.mxu0 %v354
    %527 = vmatpush.bf16.msra.mxu0 %v352
    %528 = vmatpush.bf16.msra.mxu0 %v350
    %529 = vmatpush.bf16.msra.mxu0 %v348
    %530 = vmatpush.bf16.msra.mxu0 %v346
    %531 = vmatpush.bf16.msra.mxu0 %v344
    %532 = vmatpush.bf16.msra.mxu0 %v342
    %533 = vmatmul.bf16.gmra.mxu0 %v141
    %v534 = vpop.f32.mrf.mxu0
    %v535 = vadd.f32 0.0, %v534
    %v536 = vpop.f32.mrf.mxu0
    %v537 = vadd.f32 0.0, %v536
    %538 = vdwg.mxu0
    %539 = vmatpush.bf16.msra.mxu0 %v372
    %540 = vmatpush.bf16.msra.mxu0 %v370
    %541 = vmatpush.bf16.msra.mxu0 %v368
    %542 = vmatpush.bf16.msra.mxu0 %v366
    %543 = vmatpush.bf16.msra.mxu0 %v364
    %544 = vmatpush.bf16.msra.mxu0 %v362
    %545 = vmatpush.bf16.msra.mxu0 %v360
    %546 = vmatpush.bf16.msra.mxu0 %v358
    %547 = vmatmul.bf16.gmra.mxu0 %v142
    %v548 = vpop.f32.mrf.mxu0
    %v549 = vadd.f32 %v535, %v548
    %v550 = vpop.f32.mrf.mxu0
    %v551 = vadd.f32 %v537, %v550
    %552 = vdwg.mxu0
    %553 = vmatpush.bf16.msra.mxu0 %v388
    %554 = vmatpush.bf16.msra.mxu0 %v386
    %555 = vmatpush.bf16.msra.mxu0 %v384
    %556 = vmatpush.bf16.msra.mxu0 %v382
    %557 = vmatpush.bf16.msra.mxu0 %v380
    %558 = vmatpush.bf16.msra.mxu0 %v378
    %559 = vmatpush.bf16.msra.mxu0 %v376
    %560 = vmatpush.bf16.msra.mxu0 %v374
    %561 = vmatmul.bf16.gmra.mxu0 %v143
    %v562 = vpop.f32.mrf.mxu0
    %v563 = vadd.f32 %v549, %v562
    %v564 = vpop.f32.mrf.mxu0
    %v565 = vadd.f32 %v551, %v564
    %566 = vdwg.mxu0
    %567 = vmatpush.bf16.msra.mxu0 %v404
    %568 = vmatpush.bf16.msra.mxu0 %v402
    %569 = vmatpush.bf16.msra.mxu0 %v400
    %570 = vmatpush.bf16.msra.mxu0 %v398
    %571 = vmatpush.bf16.msra.mxu0 %v396
    %572 = vmatpush.bf16.msra.mxu0 %v394
    %573 = vmatpush.bf16.msra.mxu0 %v392
    %574 = vmatpush.bf16.msra.mxu0 %v390
    %575 = vmatmul.bf16.gmra.mxu0 %v144
    %v576 = vpop.f32.mrf.mxu0
    %v577 = vadd.f32 %v563, %v576
    %v578 = vpop.f32.mrf.mxu0
    %v579 = vadd.f32 %v565, %v578
    %580 = vdwg.mxu0
    %v581 = vadd.f32 %v61, %v521
    %v582 = vadd.f32 %v62, %v577
    %v583 = vadd.f32 %v63, %v523
    %v584 = vadd.f32 %v64, %v579
    %585 = vst [vmem:[#allocation7] sm:$0xff] %v581
    %586 = vst [vmem:[#allocation7 + $0x8] sm:$0xff] %v582
    %587 = vst [vmem:[#allocation7 + $0x10] sm:$0xff] %v583
    %588 = vst [vmem:[#allocation7 + $0x18] sm:$0xff] %v584
    // Predicated region
    $region22: #{tpu_custom_call.1} parent=1 // pred_check
      _
    $region23: #{tpu_custom_call.1} parent=1 // pred_check_branch
      %590 = sbr.rel (0) target = $region25
    $region24: #{tpu_custom_call.1} parent=1 // pred_region
      %592 = vsyncadd [#allocation4], 0
      %s593 = sshll.u32 [#allocation7], 4
      %s594 = int_to_ptr.vmem [resolvable:$true] %s593
      %s595 = sshll.u32 %s2, 4
      %s596 = int_to_ptr.hbm [resolvable:$true] %s595
      %601 = dma.vmem_to_hbm [thread:$0]  %s594, 512, %s596, [#allocation4], 256, 256, 16
    $region25: #{tpu_custom_call.1} parent=1 // pred_fallthru
      _
    // Predicated region
    $region26: #{tpu_custom_call.1} parent=1 // pred_check
      _
    $region27: #{tpu_custom_call.1} parent=1 // pred_check_branch
      %603 = sbr.rel (0) target = $region29
    $region28: #{tpu_custom_call.1} parent=1 // pred_region
      %605 = dma.done [#allocation4], 512
    $region29: #{tpu_custom_call.1} parent=1 // pred_fallthru
      _
    %606 = vsyncpa [#allocation3], 1
    %607 = vsyncpa [#allocation6], 1
    %608 = vsyncpa [#allocation4], 1

</llo_original>
